<compile_context>
chip_gen: v5e
topology: v5e:2x2
jax: 0.10.0
libtpu: 0.0.40
codegen_flags: <defaults>
</compile_context>

<pallas_src>
import math
import functools

import jax
import jax.numpy as jnp
from jax.experimental import pallas as pl
from jax.experimental.pallas import tpu as pltpu


# ---------------------------------------------------------------------------
# Pallas kernel: one grid step per sequence.
#   lens_ref : (B,)      int32, SMEM (scalar prefetch) — valid length per seq
#   x_ref    : (S, D)    token embeddings (cls prepended) of this sequence
#   pe_ref   : (S, D)    positional encoding (constant block -> stays resident)
#   wqkv_ref : (D, 3D)   dense fused [Wq^T*scale | Wk^T | Wv^T]
#   bqkv_ref : (1, 3D)   fused QKV bias (bq pre-scaled)
#   woT_ref  : (D, D)    W_o^T (rows in (head, dh) order)
#   bo_ref   : (1, D)    output-projection bias
#   o_ref    : (S, D)
# ---------------------------------------------------------------------------
def mha_seq_kernel(num_heads, mxu_dtype,
                   lens_ref, x_ref, pe_ref,
                   wqkv_ref, bqkv_ref, woT_ref, bo_ref,
                   o_ref):
    S, D = x_ref.shape
    H = num_heads
    Dh = D // H

    def mm_cast(a):
        return a.astype(mxu_dtype)

    # positional encoding added in-kernel (VPU elementwise)
    xp = x_ref[...] + pe_ref[...]                                    # (S, D)

    # (2) single dense QKV projection: one (S, D) @ (D, 3D) MXU matmul.
    #     scale is already folded into the Q columns / bias (4).
    qkv = jnp.dot(mm_cast(xp), mm_cast(wqkv_ref[...]),
                  preferred_element_type=jnp.float32) + bqkv_ref[...]  # (S, 3D) f32

    # head split: static lane slices stacked on a new leading (batch) axis
    def split_heads(base):
        return jnp.stack(
            [qkv[:, base + h * Dh: base + (h + 1) * Dh] for h in range(H)],
            axis=0)                                                   # (H, S, Dh)

    q = split_heads(0)
    k = split_heads(D)
    v = split_heads(2 * D)

    # head-batched scores (scale pre-folded, so no per-score VPU multiply)
    s = jnp.einsum('hqd,hkd->hqk', mm_cast(q), mm_cast(k),
                   preferred_element_type=jnp.float32)                # (H, S, S) f32

    # (3) key-padding mask built in-kernel from the prefetched length (SMEM)
    seq_len = lens_ref[pl.program_id(0)]
    key_pos = jax.lax.broadcasted_iota(jnp.int32, (1, 1, S), 2)
    s = jnp.where(key_pos < seq_len, s, jnp.float32(-1e30))

    # softmax over keys (f32); divide moved to the EUP reciprocal slot (6)
    m = jnp.max(s, axis=-1, keepdims=True)
    p = jnp.exp(s - m)
    p = p * pl.reciprocal(jnp.sum(p, axis=-1, keepdims=True), approx=True)

    # PV (head-batched MXU matmul)
    oh = jnp.einsum('hqk,hkd->hqd', mm_cast(p), mm_cast(v),
                    preferred_element_type=jnp.float32)               # (H, S, Dh)

    # (1) fuse out-projection + head reduction: merge heads on lanes, then one
    #     (S, D) @ (D, D) contraction with K = H*Dh = D.
    oc = jnp.concatenate([oh[h] for h in range(H)], axis=-1)          # (S, D)
    y = jnp.dot(mm_cast(oc), mm_cast(woT_ref[...]),
                preferred_element_type=jnp.float32) + bo_ref[...]     # (S, D)

    o_ref[...] = y.astype(o_ref.dtype)


# ---------------------------------------------------------------------------
# Wrapper: one grid step per sequence; lengths are scalar-prefetched into SMEM.
# ---------------------------------------------------------------------------
def self_attention_pallas(x, pe, lens, wqkv, bqkv, woT, bo,
                          *, num_heads, mxu_dtype=jnp.float32):
    """x: (B, S, D) embeddings (cls already prepended). lens: (B,) valid lengths."""
    B, S, D = x.shape
    lens = lens.astype(jnp.int32)

    kernel = functools.partial(mha_seq_kernel, num_heads, mxu_dtype)
    y = pl.pallas_call(
        kernel,
        out_shape=jax.ShapeDtypeStruct((B, S, D), jnp.float32),
        grid_spec=pltpu.PrefetchScalarGridSpec(
            num_scalar_prefetch=1,               # lens -> SMEM, read in-kernel
            grid=(B,),                           # >= 2 parallel steps for B >= 2 (v7x: 2 TCs)
            in_specs=[
                # per-sequence block; last two block dims == full array dims
                pl.BlockSpec((None, S, D), lambda i, lens_s: (i, 0, 0)),   # x
                # constant-index blocks -> DMA'd once, stay resident in VMEM
                pl.BlockSpec((S, D), lambda i, lens_s: (0, 0)),            # PE
                pl.BlockSpec((D, 3 * D), lambda i, lens_s: (0, 0)),        # fused QKV W
                pl.BlockSpec((1, 3 * D), lambda i, lens_s: (0, 0)),        # fused QKV b
                pl.BlockSpec((D, D), lambda i, lens_s: (0, 0)),            # out-proj W^T
                pl.BlockSpec((1, D), lambda i, lens_s: (0, 0)),            # out-proj b
            ],
            out_specs=pl.BlockSpec((None, S, D), lambda i, lens_s: (i, 0, 0)),
        ),
        compiler_params=pltpu.CompilerParams(
            # sequences are independent -> shard grid across TensorCores
            dimension_semantics=("parallel",),
            # explicit, modest scoped-VMEM budget (safe on v5e/v6e/v7x)
            vmem_limit_bytes=32 * 1024 * 1024,
        ),
    )(lens, x, pe, wqkv, bqkv, woT, bo)
    return y


# ----------------------------- glue (plain JAX) -----------------------------
def sinusoidal_pe(max_len, d_model):
    pos = jnp.arange(max_len, dtype=jnp.float32)[:, None]
    div = jnp.exp(jnp.arange(0, d_model, 2, dtype=jnp.float32)
                  * -(math.log(10000.0) / d_model))
    pe = jnp.zeros((max_len, d_model), jnp.float32)
    pe = pe.at[:, 0::2].set(jnp.sin(pos * div))
    pe = pe.at[:, 1::2].set(jnp.cos(pos * div))
    return pe


def pack_mha_weights(in_proj_w, in_proj_b, out_proj_w, out_proj_b, num_heads):
    """nn.MultiheadAttention parameters -> dense fused Pallas layout.

    scale = 1/sqrt(Dh) is folded into the Q weight slice AND its bias (4).
    """
    D3, D = in_proj_w.shape
    assert D3 == 3 * D
    Dh = D // num_heads
    scale = 1.0 / math.sqrt(Dh)

    wq, wk, wv = in_proj_w[:D], in_proj_w[D:2 * D], in_proj_w[2 * D:]
    bq, bk, bv = in_proj_b[:D], in_proj_b[D:2 * D], in_proj_b[2 * D:]

    wqkv = jnp.concatenate([wq.T * scale, wk.T, wv.T], axis=1)       # (D, 3D)
    bqkv = jnp.concatenate([bq * scale, bk, bv])[None, :]            # (1, 3D)
    woT = out_proj_w.T                                               # (D, D), rows (h, dh)
    bo = out_proj_b[None, :]                                         # (1, D)
    return wqkv, bqkv, woT, bo


def reference_mha(x, pe, add_mask, in_proj_w, in_proj_b,
                  out_proj_w, out_proj_b, num_heads):
    B, S, D = x.shape
    H, Dh = num_heads, D // num_heads
    xb = x + pe[None]
    qkv = xb @ in_proj_w.T + in_proj_b
    q, k, v = qkv[..., :D], qkv[..., D:2 * D], qkv[..., 2 * D:]
    qh = q.reshape(B, S, H, Dh).transpose(0, 2, 1, 3)
    kh = k.reshape(B, S, H, Dh).transpose(0, 2, 1, 3)
    vh = v.reshape(B, S, H, Dh).transpose(0, 2, 1, 3)
    s = jnp.einsum('bhqd,bhkd->bhqk', qh, kh) / math.sqrt(Dh)
    s = s + add_mask[:, None, None, :]
    p = jax.nn.softmax(s, axis=-1)
    o = jnp.einsum('bhqk,bhkd->bhqd', p, vh)
    o = o.transpose(0, 2, 1, 3).reshape(B, S, D)
    return o @ out_proj_w.T + out_proj_b


if __name__ == "__main__":
    # ---- configuration (small, consistent with the module) ----
    vocab_size, embed_dim, num_heads = 100, 32, 4
    B, T = 2, 8
    S = T + 1                      # cls token prepended
    D = embed_dim

    key = jax.random.PRNGKey(0)
    k_emb, k_tok, k_inw, k_outw = jax.random.split(key, 4)

    # ---- deterministic parameter init (shapes from __init__) ----
    emb_table = jax.random.normal(k_emb, (vocab_size, D), jnp.float32)      # nn.Embedding
    cls_token = jnp.zeros((1, 1, D), jnp.float32)                           # nn.Parameter(zeros)

    bound_in = math.sqrt(6.0 / (D + 3 * D))                                  # xavier_uniform
    in_proj_w = jax.random.uniform(k_inw, (3 * D, D), jnp.float32,
                                   minval=-bound_in, maxval=bound_in)
    in_proj_b = jnp.zeros((3 * D,), jnp.float32)
    bound_out = math.sqrt(1.0 / D)
    out_proj_w = jax.random.uniform(k_outw, (D, D), jnp.float32,
                                    minval=-bound_out, maxval=bound_out)
    out_proj_b = jnp.zeros((D,), jnp.float32)

    wqkv, bqkv, woT, bo = pack_mha_weights(
        in_proj_w, in_proj_b, out_proj_w, out_proj_b, num_heads)

    # ---- inputs ----
    tokens = jax.random.randint(k_tok, (B, T), 0, vocab_size)                # input_dict['text']
    text_len = jnp.array([8, 5], jnp.int32)                                  # input_dict['text_len']

    # embedding lookup + cls token concat (glue, outside the kernel)
    embs = emb_table[tokens]                                                 # (B, T, D)
    x = jnp.concatenate([jnp.broadcast_to(cls_token, (B, 1, D)), embs],
                        axis=1)                                              # (B, S, D)

    # positional encoding table
    pe = sinusoidal_pe(100, D)[:S]                                           # (S, D)

    # lens = text_len + 1 (cls counted); key-padding mask is built IN-KERNEL
    lens = text_len + 1                                                      # (B,)

    # ---- run the Pallas kernel (B parallel grid steps) ----
    # For production D >= 128 on v6e/v7x pass mxu_dtype=jnp.bfloat16.
    y = self_attention_pallas(x, pe, lens, wqkv, bqkv, woT, bo,
                              num_heads=num_heads, mxu_dtype=jnp.float32)
    y = jax.block_until_ready(y)

    # outputs as in the PyTorch module
    token_emb = y[:, 1:]        # (B, T, D)
    seq_emb = y[:, 0]           # (B, D)

    # sanity check vs pure-JAX reference (tolerance covers approx reciprocal)
    valid = jnp.arange(S)[None, :] < lens[:, None]                           # (B, S)
    add_mask = jnp.where(valid, 0.0, -1e30).astype(jnp.float32)
    y_ref = reference_mha(x, pe, add_mask, in_proj_w, in_proj_b,
                          out_proj_w, out_proj_b, num_heads)
    assert token_emb.shape == (B, T, D) and seq_emb.shape == (B, D)
    assert jnp.allclose(y, y_ref, atol=2e-3, rtol=2e-3), "mismatch vs reference"

    print("KERNEL_OK")
</pallas_src>

<mosaic_0001>
module attributes {stable_mosaic.version = 11 : i64} {
  func.func @mha_seq_kernel(%arg0: i32, %arg1: memref<2xi32, #tpu.memory_space<smem>>, %arg2: memref<1x9x32xf32, #tpu.memory_space<vmem>>, %arg3: memref<9x32xf32, #tpu.memory_space<vmem>>, %arg4: memref<32x96xf32, #tpu.memory_space<vmem>>, %arg5: memref<1x96xf32, #tpu.memory_space<vmem>>, %arg6: memref<32x32xf32, #tpu.memory_space<vmem>>, %arg7: memref<1x32xf32, #tpu.memory_space<vmem>>, %arg8: memref<1x9x32xf32, #tpu.memory_space<vmem>>) attributes {dimension_semantics = [#tpu.dimension_semantics<parallel>], iteration_bounds = array<i64: 2>, scalar_prefetch = 1 : i64, scratch_operands = 0 : i64, tpu.core_type = #tpu.core_type<tc>, window_params = [{transform_indices = @transform_0, window_bounds = array<i64: 1, 9, 32>}, {pipeline_mode = #tpu.pipeline_mode<synchronous>, transform_indices = @transform_1, window_bounds = array<i64: 9, 32>}, {pipeline_mode = #tpu.pipeline_mode<synchronous>, transform_indices = @transform_2, window_bounds = array<i64: 32, 96>}, {pipeline_mode = #tpu.pipeline_mode<synchronous>, transform_indices = @transform_3, window_bounds = array<i64: 1, 96>}, {pipeline_mode = #tpu.pipeline_mode<synchronous>, transform_indices = @transform_4, window_bounds = array<i64: 32, 32>}, {pipeline_mode = #tpu.pipeline_mode<synchronous>, transform_indices = @transform_5, window_bounds = array<i64: 1, 32>}, {transform_indices = @transform_6, window_bounds = array<i64: 1, 9, 32>}]} {
    %c0 = arith.constant 0 : index
    %c0_0 = arith.constant 0 : index
    %c0_1 = arith.constant 0 : index
    %0 = vector.load %arg2[%c0, %c0_0, %c0_1] : memref<1x9x32xf32, #tpu.memory_space<vmem>>, vector<1x9x32xf32>
    %1 = vector.shape_cast %0 : vector<1x9x32xf32> to vector<9x32xf32>
    %c0_2 = arith.constant 0 : index
    %c0_3 = arith.constant 0 : index
    %2 = vector.load %arg3[%c0_2, %c0_3] : memref<9x32xf32, #tpu.memory_space<vmem>>, vector<9x32xf32>
    %3 = arith.addf %1, %2 : vector<9x32xf32>
    %c0_4 = arith.constant 0 : index
    %c0_5 = arith.constant 0 : index
    %4 = vector.load %arg4[%c0_4, %c0_5] : memref<32x96xf32, #tpu.memory_space<vmem>>, vector<32x96xf32>
    %cst = arith.constant dense<0.000000e+00> : vector<9x96xf32>
    %5 = tpu.matmul %3, %4, %cst {dimension_numbers = #tpu.dot_dimension_numbers<[1], [0], [0], [1], [0, 0, 1, 1], [], []>} : vector<9x32xf32>, vector<32x96xf32>, vector<9x96xf32> -> vector<9x96xf32>
    %c0_6 = arith.constant 0 : index
    %c0_7 = arith.constant 0 : index
    %6 = vector.load %arg5[%c0_6, %c0_7] : memref<1x96xf32, #tpu.memory_space<vmem>>, vector<1x96xf32>
    %7 = vector.broadcast %6 : vector<1x96xf32> to vector<9x96xf32>
    %8 = arith.addf %5, %7 : vector<9x96xf32>
    %9 = vector.extract_strided_slice %8 {offsets = [0, 0], sizes = [9, 8], strides = [1, 1]} : vector<9x96xf32> to vector<9x8xf32>
    %10 = vector.extract_strided_slice %8 {offsets = [0, 8], sizes = [9, 8], strides = [1, 1]} : vector<9x96xf32> to vector<9x8xf32>
    %11 = vector.extract_strided_slice %8 {offsets = [0, 16], sizes = [9, 8], strides = [1, 1]} : vector<9x96xf32> to vector<9x8xf32>
    %12 = vector.extract_strided_slice %8 {offsets = [0, 24], sizes = [9, 8], strides = [1, 1]} : vector<9x96xf32> to vector<9x8xf32>
    %13 = vector.shape_cast %9 : vector<9x8xf32> to vector<1x9x8xf32>
    %14 = vector.shape_cast %10 : vector<9x8xf32> to vector<1x9x8xf32>
    %15 = vector.shape_cast %11 : vector<9x8xf32> to vector<1x9x8xf32>
    %16 = vector.shape_cast %12 : vector<9x8xf32> to vector<1x9x8xf32>
    %17 = tpu.concatenate %13, %14, %15, %16 in 0 : vector<1x9x8xf32>, vector<1x9x8xf32>, vector<1x9x8xf32>, vector<1x9x8xf32> -> vector<4x9x8xf32>
    %18 = vector.extract_strided_slice %8 {offsets = [0, 32], sizes = [9, 8], strides = [1, 1]} : vector<9x96xf32> to vector<9x8xf32>
    %19 = vector.extract_strided_slice %8 {offsets = [0, 40], sizes = [9, 8], strides = [1, 1]} : vector<9x96xf32> to vector<9x8xf32>
    %20 = vector.extract_strided_slice %8 {offsets = [0, 48], sizes = [9, 8], strides = [1, 1]} : vector<9x96xf32> to vector<9x8xf32>
    %21 = vector.extract_strided_slice %8 {offsets = [0, 56], sizes = [9, 8], strides = [1, 1]} : vector<9x96xf32> to vector<9x8xf32>
    %22 = vector.shape_cast %18 : vector<9x8xf32> to vector<1x9x8xf32>
    %23 = vector.shape_cast %19 : vector<9x8xf32> to vector<1x9x8xf32>
    %24 = vector.shape_cast %20 : vector<9x8xf32> to vector<1x9x8xf32>
    %25 = vector.shape_cast %21 : vector<9x8xf32> to vector<1x9x8xf32>
    %26 = tpu.concatenate %22, %23, %24, %25 in 0 : vector<1x9x8xf32>, vector<1x9x8xf32>, vector<1x9x8xf32>, vector<1x9x8xf32> -> vector<4x9x8xf32>
    %27 = vector.extract_strided_slice %8 {offsets = [0, 64], sizes = [9, 8], strides = [1, 1]} : vector<9x96xf32> to vector<9x8xf32>
    %28 = vector.extract_strided_slice %8 {offsets = [0, 72], sizes = [9, 8], strides = [1, 1]} : vector<9x96xf32> to vector<9x8xf32>
    %29 = vector.extract_strided_slice %8 {offsets = [0, 80], sizes = [9, 8], strides = [1, 1]} : vector<9x96xf32> to vector<9x8xf32>
    %30 = vector.extract_strided_slice %8 {offsets = [0, 88], sizes = [9, 8], strides = [1, 1]} : vector<9x96xf32> to vector<9x8xf32>
    %31 = vector.shape_cast %27 : vector<9x8xf32> to vector<1x9x8xf32>
    %32 = vector.shape_cast %28 : vector<9x8xf32> to vector<1x9x8xf32>
    %33 = vector.shape_cast %29 : vector<9x8xf32> to vector<1x9x8xf32>
    %34 = vector.shape_cast %30 : vector<9x8xf32> to vector<1x9x8xf32>
    %35 = tpu.concatenate %31, %32, %33, %34 in 0 : vector<1x9x8xf32>, vector<1x9x8xf32>, vector<1x9x8xf32>, vector<1x9x8xf32> -> vector<4x9x8xf32>
    "tpu.trace_start"() <{level = 10 : i32, message = "hqd,hkd->hqk"}> : () -> ()
    %cst_8 = arith.constant dense<0.000000e+00> : vector<4x9x9xf32>
    %36 = tpu.matmul %17, %26, %cst_8 {dimension_numbers = #tpu.dot_dimension_numbers<[2], [2], [1], [1], [0, 0, 0, 1, 1, 1], [0], [0]>} : vector<4x9x8xf32>, vector<4x9x8xf32>, vector<4x9x9xf32> -> vector<4x9x9xf32>
    "tpu.trace_stop"() : () -> ()
    %37 = arith.index_cast %arg0 : i32 to index
    %38 = memref.load %arg1[%37] : memref<2xi32, #tpu.memory_space<smem>>
    %39 = tpu.iota {dimensions = array<i32: 2>} : vector<1x1x9xi32>
    %40 = vector.broadcast %38 : i32 to vector<1x1x9xi32>
    %41 = arith.cmpi slt, %39, %40 : vector<1x1x9xi32>
    %cst_9 = arith.constant -1.000000e+30 : f32
    %42 = vector.shape_cast %41 : vector<1x1x9xi1> to vector<1x1x9xi1>
    %43 = vector.broadcast %42 : vector<1x1x9xi1> to vector<4x9x9xi1>
    %44 = vector.broadcast %cst_9 : f32 to vector<4x9x9xf32>
    %45 = arith.select %43, %36, %44 : vector<4x9x9xi1>, vector<4x9x9xf32>
    %cst_10 = arith.constant dense<0xFF800000> : vector<4x9xf32>
    %46 = vector.multi_reduction <maximumf>, %45, %cst_10 [2] : vector<4x9x9xf32> to vector<4x9xf32>
    %47 = vector.shape_cast %46 : vector<4x9xf32> to vector<4x9x1xf32>
    %48 = vector.broadcast %47 : vector<4x9x1xf32> to vector<4x9x9xf32>
    %49 = arith.subf %45, %48 : vector<4x9x9xf32>
    %50 = math.exp %49 : vector<4x9x9xf32>
    %cst_11 = arith.constant dense<0.000000e+00> : vector<4x9xf32>
    %51 = vector.multi_reduction <add>, %50, %cst_11 [2] : vector<4x9x9xf32> to vector<4x9xf32>
    %52 = vector.shape_cast %51 : vector<4x9xf32> to vector<4x9x1xf32>
    %53 = tpu.reciprocal %52 {approx = true} : vector<4x9x1xf32> -> vector<4x9x1xf32>
    %54 = vector.broadcast %53 : vector<4x9x1xf32> to vector<4x9x9xf32>
    %55 = arith.mulf %50, %54 : vector<4x9x9xf32>
    "tpu.trace_start"() <{level = 10 : i32, message = "hqk,hkd->hqd"}> : () -> ()
    %cst_12 = arith.constant dense<0.000000e+00> : vector<4x9x8xf32>
    %56 = tpu.matmul %55, %35, %cst_12 {dimension_numbers = #tpu.dot_dimension_numbers<[2], [1], [1], [2], [0, 0, 0, 1, 1, 2], [0], [0]>} : vector<4x9x9xf32>, vector<4x9x8xf32>, vector<4x9x8xf32> -> vector<4x9x8xf32>
    "tpu.trace_stop"() : () -> ()
    %57 = vector.extract_strided_slice %56 {offsets = [0, 0, 0], sizes = [1, 9, 8], strides = [1, 1, 1]} : vector<4x9x8xf32> to vector<1x9x8xf32>
    %58 = vector.shape_cast %57 : vector<1x9x8xf32> to vector<9x8xf32>
    %59 = vector.extract_strided_slice %56 {offsets = [1, 0, 0], sizes = [1, 9, 8], strides = [1, 1, 1]} : vector<4x9x8xf32> to vector<1x9x8xf32>
    %60 = vector.shape_cast %59 : vector<1x9x8xf32> to vector<9x8xf32>
    %61 = vector.extract_strided_slice %56 {offsets = [2, 0, 0], sizes = [1, 9, 8], strides = [1, 1, 1]} : vector<4x9x8xf32> to vector<1x9x8xf32>
    %62 = vector.shape_cast %61 : vector<1x9x8xf32> to vector<9x8xf32>
    %63 = vector.extract_strided_slice %56 {offsets = [3, 0, 0], sizes = [1, 9, 8], strides = [1, 1, 1]} : vector<4x9x8xf32> to vector<1x9x8xf32>
    %64 = vector.shape_cast %63 : vector<1x9x8xf32> to vector<9x8xf32>
    %65 = tpu.concatenate %58, %60, %62, %64 in 1 : vector<9x8xf32>, vector<9x8xf32>, vector<9x8xf32>, vector<9x8xf32> -> vector<9x32xf32>
    %c0_13 = arith.constant 0 : index
    %c0_14 = arith.constant 0 : index
    %66 = vector.load %arg6[%c0_13, %c0_14] : memref<32x32xf32, #tpu.memory_space<vmem>>, vector<32x32xf32>
    %cst_15 = arith.constant dense<0.000000e+00> : vector<9x32xf32>
    %67 = tpu.matmul %65, %66, %cst_15 {dimension_numbers = #tpu.dot_dimension_numbers<[1], [0], [0], [1], [0, 0, 1, 1], [], []>} : vector<9x32xf32>, vector<32x32xf32>, vector<9x32xf32> -> vector<9x32xf32>
    %c0_16 = arith.constant 0 : index
    %c0_17 = arith.constant 0 : index
    %68 = vector.load %arg7[%c0_16, %c0_17] : memref<1x32xf32, #tpu.memory_space<vmem>>, vector<1x32xf32>
    %69 = vector.broadcast %68 : vector<1x32xf32> to vector<9x32xf32>
    %70 = arith.addf %67, %69 : vector<9x32xf32>
    %c0_18 = arith.constant 0 : index
    %c0_19 = arith.constant 0 : index
    %c0_20 = arith.constant 0 : index
    %71 = vector.load %arg8[%c0_18, %c0_19, %c0_20] : memref<1x9x32xf32, #tpu.memory_space<vmem>>, vector<1x9x32xf32>
    %72 = vector.shape_cast %71 : vector<1x9x32xf32> to vector<9x32xf32>
    %73 = vector.shape_cast %70 : vector<9x32xf32> to vector<1x9x32xf32>
    tpu.vector_store %arg8[%c0_18, %c0_19, %c0_20], %73 {strides = array<i32>} : memref<1x9x32xf32, #tpu.memory_space<vmem>>, vector<1x9x32xf32>,
    return
  }
  func.func @transform_0(%arg0: i32, %arg1: memref<2xi32, #tpu.memory_space<smem>>) -> (i32, i32, i32) {
    %c0_i32 = arith.constant 0 : i32
    %c0_i32_0 = arith.constant 0 : i32
    %c0_i32_1 = arith.constant 0 : i32
    return %arg0, %c0_i32, %c0_i32_0 : i32, i32, i32
  }
  func.func @transform_1(%arg0: i32, %arg1: memref<2xi32, #tpu.memory_space<smem>>) -> (i32, i32) {
    %c0_i32 = arith.constant 0 : i32
    %c0_i32_0 = arith.constant 0 : i32
    %c0_i32_1 = arith.constant 0 : i32
    return %c0_i32, %c0_i32_0 : i32, i32
  }
  func.func @transform_2(%arg0: i32, %arg1: memref<2xi32, #tpu.memory_space<smem>>) -> (i32, i32) {
    %c0_i32 = arith.constant 0 : i32
    %c0_i32_0 = arith.constant 0 : i32
    %c0_i32_1 = arith.constant 0 : i32
    return %c0_i32, %c0_i32_0 : i32, i32
  }
  func.func @transform_3(%arg0: i32, %arg1: memref<2xi32, #tpu.memory_space<smem>>) -> (i32, i32) {
    %c0_i32 = arith.constant 0 : i32
    %c0_i32_0 = arith.constant 0 : i32
    %c0_i32_1 = arith.constant 0 : i32
    return %c0_i32, %c0_i32_0 : i32, i32
  }
  func.func @transform_4(%arg0: i32, %arg1: memref<2xi32, #tpu.memory_space<smem>>) -> (i32, i32) {
    %c0_i32 = arith.constant 0 : i32
    %c0_i32_0 = arith.constant 0 : i32
    %c0_i32_1 = arith.constant 0 : i32
    return %c0_i32, %c0_i32_0 : i32, i32
  }
  func.func @transform_5(%arg0: i32, %arg1: memref<2xi32, #tpu.memory_space<smem>>) -> (i32, i32) {
    %c0_i32 = arith.constant 0 : i32
    %c0_i32_0 = arith.constant 0 : i32
    %c0_i32_1 = arith.constant 0 : i32
    return %c0_i32, %c0_i32_0 : i32, i32
  }
  func.func @transform_6(%arg0: i32, %arg1: memref<2xi32, #tpu.memory_space<smem>>) -> (i32, i32, i32) {
    %c0_i32 = arith.constant 0 : i32
    %c0_i32_0 = arith.constant 0 : i32
    %c0_i32_1 = arith.constant 0 : i32
    return %arg0, %c0_i32, %c0_i32_0 : i32, i32, i32
  }
}

</mosaic_0001>

<llo_original>
// kernel: tpu_custom_call.1
$region0: #{tpu_custom_call.1}
  #allocation0 [shape = 'u32[]', space=smem, size = 0x4, offset = 0x4, fixed_abs, tag = 'smem constant byte address 0x4 - core index']
  #allocation1 [shape = 'u32[72,128]{1,0:T(1,128)}', space=vmem, size = 0x9000, scoped, tag = 'internal scratch']
  #allocation2 [shape = 's32[1]{0}', space=sflag, size = 0x4, scoped, tag = 'scoped memory for tpu_custom_call.1']
  #allocation3 [shape = 'u8[512]{0}', space=smem, size = 0x200, scoped, tag = 'prefetched SMEM operand 0']
  %s0 = inlined_call_operand.vmem [shape: s32[2], index: 0, kind: input, shape index: {}]
  %s1 = inlined_call_operand.vmem [shape: f32[2,9,32], index: 1, kind: input, shape index: {}]
  %s2 = inlined_call_operand.vmem [shape: f32[9,32], index: 2, kind: input, shape index: {}]
  %s3 = inlined_call_operand.vmem [shape: f32[32,96], index: 3, kind: input, shape index: {}]
  %s4 = inlined_call_operand.vmem [shape: f32[1,96], index: 4, kind: input, shape index: {}]
  %s5 = inlined_call_operand.hbm [shape: f32[32,32], index: 5, kind: input, shape index: {}]
  %s6 = inlined_call_operand.vmem [shape: f32[1,32], index: 6, kind: input, shape index: {}]
  %s7 = inlined_call_operand.vmem [shape: f32[2,9,32], index: 7, kind: output, shape index: {}]
  %s8 = sld [smem:[#allocation0]]
  $region61: #{tpu_custom_call.1} parent=0
    _
  %s10 = ssub.s32 1, %s8
  %s11 = scalar_select 0, %s10, %s8
  %s13 = sshll.u32 %s0, 4
  %s14 = int_to_ptr.vmem [resolvable:$true] %s13
  %16 = dma.vmem_to_smem %s14, 16, [#allocation3], [#allocation2]
  %18 = dma.done [#allocation2], 16
  %19 = sfence
  $region1: #{tpu_custom_call.1} parent=0
    #allocation4 [shape = 'u8[16384]{0}', space=vmem, size = 0x4000, scoped, tag = 'input window, operand 5, single buffered']
    #allocation5 [shape = 's32[2]{0}', space=sflag, size = 0x8, scoped, tag = 'scoped memory for tpu_custom_call.1']
    %20 = vsyncpa [#allocation5], 0
    loop: start=0, step=1, limit=4
    $region2: #{tpu_custom_call.1} parent=1 // loop_pre_header
      _
    $region3: #{tpu_custom_call.1} parent=1 // loop_header
      %s22 = sphi 0, %s26
      %p23 = scmp.ge.s32.totalorder %s22, 4
      %s32 = sphi 0, %s34
      %s35 = sphi 0, %s32
      %s36 = sphi 0, %s35
      %s52 = sphi 0, %s36
      %s56 = sphi 0, %s56
      %s58 = sphi 0, %s56
      %s59 = sphi 0, %s58
      %s73 = sphi 0, %s59
      %s77 = sphi 0, %s77
      %s79 = sphi 0, %s77
      %s80 = sphi 0, %s79
      %s94 = sphi 0, %s80
      %s98 = sphi 0, %s98
      %s100 = sphi 0, %s98
      %s101 = sphi 0, %s100
      %s115 = sphi 0, %s101
      %s119 = sphi 0, %s119
      %s121 = sphi 0, %s119
      %s122 = sphi 0, %s121
      %s136 = sphi 0, %s122
      %s140 = sphi 0, %s140
      %s142 = sphi 0, %s140
      %s143 = sphi 0, %s142
      %s157 = sphi 0, %s143
      %s163 = sphi 0, %s165
      %s166 = sphi 0, %s163
      %s167 = sphi 0, %s166
      %s183 = sphi 0, %s167
    $region4: #{tpu_custom_call.1} parent=1 // loop_header_branch
      %25 = sbr.rel (%p23) target = $region8
    $region5: #{tpu_custom_call.1} parent=1 // loop_body
      %s27 = ssub.s32 %s22, 1
      %s28 = ssub.s32 %s22, 2
      %s29 = sadd.s32 %s22, 1
      %s30 = ssub.s32 %s22, %s29
      %p31 = scmp.eq.s32.totalorder %s30, 0
      %s33 = sadd.s32 %s32, 1
      %s34 = scalar_select %p31, %s32, %s33
      %p37 = pneg %p31
      %p38 = scmp.eq.s32.totalorder %s22, 1
      %p39 = por %p37, %p38
      %p40 = scmp.ne.s32.totalorder %s32, %s35
      %p41 = scmp.eq.s32.totalorder %s22, 0
      %p42 = por %p40, %p41
      %p43 = scmp.ne.s32.totalorder %s32, %s35
      %p44 = scmp.eq.s32.totalorder %s27, 1
      %p45 = por %p43, %p44
      %p46 = scmp.ne.s32.totalorder %s35, %s36
      %p47 = scmp.eq.s32.totalorder %s27, 0
      %p48 = por %p46, %p47
      %p49 = scmp.ne.s32.totalorder %s35, %s36
      %p50 = scmp.eq.s32.totalorder %s28, 1
      %p51 = por %p49, %p50
      %p53 = scmp.ne.s32.totalorder %s36, %s52
      %p54 = scmp.eq.s32.totalorder %s28, 0
      %p55 = por %p53, %p54
      %s57 = sadd.s32 %s56, 1
      %p60 = scmp.eq.s32.totalorder %s22, 1
      %p61 = scmp.ne.s32.totalorder %s56, %s58
      %p62 = scmp.eq.s32.totalorder %s22, 0
      %p63 = por %p61, %p62
      %p64 = scmp.ne.s32.totalorder %s56, %s58
      %p65 = scmp.eq.s32.totalorder %s27, 1
      %p66 = por %p64, %p65
      %p67 = scmp.ne.s32.totalorder %s58, %s59
      %p68 = scmp.eq.s32.totalorder %s27, 0
      %p69 = por %p67, %p68
      %p70 = scmp.ne.s32.totalorder %s58, %s59
      %p71 = scmp.eq.s32.totalorder %s28, 1
      %p72 = por %p70, %p71
      %p74 = scmp.ne.s32.totalorder %s59, %s73
      %p75 = scmp.eq.s32.totalorder %s28, 0
      %p76 = por %p74, %p75
      %s78 = sadd.s32 %s77, 1
      %p81 = scmp.eq.s32.totalorder %s22, 1
      %p82 = scmp.ne.s32.totalorder %s77, %s79
      %p83 = scmp.eq.s32.totalorder %s22, 0
      %p84 = por %p82, %p83
      %p85 = scmp.ne.s32.totalorder %s77, %s79
      %p86 = scmp.eq.s32.totalorder %s27, 1
      %p87 = por %p85, %p86
      %p88 = scmp.ne.s32.totalorder %s79, %s80
      %p89 = scmp.eq.s32.totalorder %s27, 0
      %p90 = por %p88, %p89
      %p91 = scmp.ne.s32.totalorder %s79, %s80
      %p92 = scmp.eq.s32.totalorder %s28, 1
      %p93 = por %p91, %p92
      %p95 = scmp.ne.s32.totalorder %s80, %s94
      %p96 = scmp.eq.s32.totalorder %s28, 0
      %p97 = por %p95, %p96
      %s99 = sadd.s32 %s98, 1
      %p102 = scmp.eq.s32.totalorder %s22, 1
      %p103 = scmp.ne.s32.totalorder %s98, %s100
      %p104 = scmp.eq.s32.totalorder %s22, 0
      %p105 = por %p103, %p104
      %p106 = scmp.ne.s32.totalorder %s98, %s100
      %p107 = scmp.eq.s32.totalorder %s27, 1
      %p108 = por %p106, %p107
      %p109 = scmp.ne.s32.totalorder %s100, %s101
      %p110 = scmp.eq.s32.totalorder %s27, 0
      %p111 = por %p109, %p110
      %p112 = scmp.ne.s32.totalorder %s100, %s101
      %p113 = scmp.eq.s32.totalorder %s28, 1
      %p114 = por %p112, %p113
      %p116 = scmp.ne.s32.totalorder %s101, %s115
      %p117 = scmp.eq.s32.totalorder %s28, 0
      %p118 = por %p116, %p117
      %s120 = sadd.s32 %s119, 1
      %p123 = scmp.eq.s32.totalorder %s22, 1
      %p124 = scmp.ne.s32.totalorder %s119, %s121
      %p125 = scmp.eq.s32.totalorder %s22, 0
      %p126 = por %p124, %p125
      %p127 = scmp.ne.s32.totalorder %s119, %s121
      %p128 = scmp.eq.s32.totalorder %s27, 1
      %p129 = por %p127, %p128
      %p130 = scmp.ne.s32.totalorder %s121, %s122
      %p131 = scmp.eq.s32.totalorder %s27, 0
      %p132 = por %p130, %p131
      %p133 = scmp.ne.s32.totalorder %s121, %s122
      %p134 = scmp.eq.s32.totalorder %s28, 1
      %p135 = por %p133, %p134
      %p137 = scmp.ne.s32.totalorder %s122, %s136
      %p138 = scmp.eq.s32.totalorder %s28, 0
      %p139 = por %p137, %p138
      %s141 = sadd.s32 %s140, 1
      %p144 = scmp.eq.s32.totalorder %s22, 1
      %p145 = scmp.ne.s32.totalorder %s140, %s142
      %p146 = scmp.eq.s32.totalorder %s22, 0
      %p147 = por %p145, %p146
      %p148 = scmp.ne.s32.totalorder %s140, %s142
      %p149 = scmp.eq.s32.totalorder %s27, 1
      %p150 = por %p148, %p149
      %p151 = scmp.ne.s32.totalorder %s142, %s143
      %p152 = scmp.eq.s32.totalorder %s27, 0
      %p153 = por %p151, %p152
      %p154 = scmp.ne.s32.totalorder %s142, %s143
      %p155 = scmp.eq.s32.totalorder %s28, 1
      %p156 = por %p154, %p155
      %p158 = scmp.ne.s32.totalorder %s143, %s157
      %p159 = scmp.eq.s32.totalorder %s28, 0
      %p160 = por %p158, %p159
      %s161 = ssub.s32 %s22, %s29
      %p162 = scmp.eq.s32.totalorder %s161, 0
      %s164 = sadd.s32 %s163, 1
      %s165 = scalar_select %p162, %s163, %s164
      %p168 = pneg %p162
      %p169 = scmp.eq.s32.totalorder %s22, 1
      %p170 = por %p168, %p169
      %p171 = scmp.ne.s32.totalorder %s163, %s166
      %p172 = scmp.eq.s32.totalorder %s22, 0
      %p173 = por %p171, %p172
      %p174 = scmp.ne.s32.totalorder %s163, %s166
      %p175 = scmp.eq.s32.totalorder %s27, 1
      %p176 = por %p174, %p175
      %p177 = scmp.ne.s32.totalorder %s166, %s167
      %p178 = scmp.eq.s32.totalorder %s27, 0
      %p179 = por %p177, %p178
      %p180 = scmp.ne.s32.totalorder %s166, %s167
      %p181 = scmp.eq.s32.totalorder %s28, 1
      %p182 = por %p180, %p181
      %p184 = scmp.ne.s32.totalorder %s167, %s183
      %p185 = scmp.eq.s32.totalorder %s28, 0
      %p186 = por %p184, %p185
      %p187 = scmp.le.s32.totalorder 1, %s22
      %p188 = scmp.lt.s32.totalorder %s22, 3
      %p189 = pnand %p187, %p188
      %p190 = pneg %p189
      // Predicated region
      $region9: #{tpu_custom_call.1} parent=5 // pred_check
        _
      $region10: #{tpu_custom_call.1} parent=5 // pred_check_branch
        %192 = sbr.rel (%p189) target = $region12
      $region11: #{tpu_custom_call.1} parent=5 // pred_region
        %s193 = ssub.s32 %s22, 1
        // Predicated region
        $region13: #{tpu_custom_call.1} parent=11 // pred_check
          %p194 = pneg %p69
        $region14: #{tpu_custom_call.1} parent=11 // pred_check_branch
          %196 = sbr.rel (%p194) target = $region16
        $region15: #{tpu_custom_call.1} parent=11 // pred_region
          _
        $region16: #{tpu_custom_call.1} parent=11 // pred_fallthru
          _
        // Predicated region
        $region17: #{tpu_custom_call.1} parent=11 // pred_check
          %p197 = pneg %p90
        $region18: #{tpu_custom_call.1} parent=11 // pred_check_branch
          %199 = sbr.rel (%p197) target = $region20
        $region19: #{tpu_custom_call.1} parent=11 // pred_region
          _
        $region20: #{tpu_custom_call.1} parent=11 // pred_fallthru
          _
        // Predicated region
        $region21: #{tpu_custom_call.1} parent=11 // pred_check
          %p200 = pneg %p111
        $region22: #{tpu_custom_call.1} parent=11 // pred_check_branch
          %202 = sbr.rel (%p200) target = $region24
        $region23: #{tpu_custom_call.1} parent=11 // pred_region
          _
        $region24: #{tpu_custom_call.1} parent=11 // pred_fallthru
          _
        // Predicated region
        $region25: #{tpu_custom_call.1} parent=11 // pred_check
          %p203 = pneg %p132
        $region26: #{tpu_custom_call.1} parent=11 // pred_check_branch
          %205 = sbr.rel (%p203) target = $region28
        $region27: #{tpu_custom_call.1} parent=11 // pred_region
          %207 = vsyncadd [#allocation5], 0
          %s208 = sshll.u32 %s5, 4
          %s209 = int_to_ptr.hbm [resolvable:$true] %s208
          %s210 = sshll.u32 [#allocation4], 4
          %s211 = int_to_ptr.vmem [resolvable:$true] %s210
          %216 = dma.hbm_to_vmem [thread:$0]  %s209, 512, %s211, [#allocation5], 128, 128, 8
        $region28: #{tpu_custom_call.1} parent=11 // pred_fallthru
          _
        // Predicated region
        $region29: #{tpu_custom_call.1} parent=11 // pred_check
          %p217 = pneg %p153
        $region30: #{tpu_custom_call.1} parent=11 // pred_check_branch
          %219 = sbr.rel (%p217) target = $region32
        $region31: #{tpu_custom_call.1} parent=11 // pred_region
          _
        $region32: #{tpu_custom_call.1} parent=11 // pred_fallthru
          _
      $region12: #{tpu_custom_call.1} parent=5 // pred_fallthru
        _
      %p220 = scmp.lt.s32.totalorder %s22, 2
      // Predicated region
      $region33: #{tpu_custom_call.1} parent=5 // pred_check
        %p221 = pneg %p220
      $region34: #{tpu_custom_call.1} parent=5 // pred_check_branch
        %223 = sbr.rel (%p221) target = $region36
      $region35: #{tpu_custom_call.1} parent=5 // pred_region
        // Predicated region
        $region37: #{tpu_custom_call.1} parent=35 // pred_check
          %p224 = pneg %p42
        $region38: #{tpu_custom_call.1} parent=35 // pred_check_branch
          %226 = sbr.rel (%p224) target = $region40
        $region39: #{tpu_custom_call.1} parent=35 // pred_region
          %p227 = scmp.lt.s32.totalorder %s22, 1
          %s228 = scalar_select %p227, %s22, 1
          %s229 = smul.addr %s228, 2
          %s230 = smul.addr %s229, 8
          %s231 = scalar_lea.vmem %s1, %s230
        $region40: #{tpu_custom_call.1} parent=35 // pred_fallthru
          _
      $region36: #{tpu_custom_call.1} parent=5 // pred_fallthru
        _
      %p232 = scmp.le.s32.totalorder 1, %s22
      %p233 = scmp.lt.s32.totalorder %s22, 3
      %p234 = pnand %p232, %p233
      %p235 = pneg %p234
      // Predicated region
      $region41: #{tpu_custom_call.1} parent=5 // pred_check
        _
      $region42: #{tpu_custom_call.1} parent=5 // pred_check_branch
        %237 = sbr.rel (%p234) target = $region44
      $region43: #{tpu_custom_call.1} parent=5 // pred_region
        %s238 = ssub.s32 %s22, 1
        // Predicated region
        $region45: #{tpu_custom_call.1} parent=43 // pred_check
          %p239 = pneg %p132
        $region46: #{tpu_custom_call.1} parent=43 // pred_check_branch
          %241 = sbr.rel (%p239) target = $region48
        $region47: #{tpu_custom_call.1} parent=43 // pred_region
          %243 = dma.done [#allocation5], 512
        $region48: #{tpu_custom_call.1} parent=43 // pred_fallthru
          _
        %p244 = scmp.lt.s32.totalorder %s27, 1
        %s245 = scalar_select %p244, %s27, 1
        %s246 = smul.addr %s245, 2
        %s247 = smul.addr %s246, 8
        %s248 = scalar_lea.vmem %s1, %s247
        %p249 = pneg %p48
        %p250 = pneg %p45
        %p251 = pneg %p69
        %p252 = pneg %p66
        %p253 = pneg %p90
        %p254 = pneg %p87
        %p255 = pneg %p111
        %p256 = pneg %p108
        %p257 = pneg %p132
        %p258 = pneg %p129
        %p259 = pneg %p153
        %p260 = pneg %p150
        %p261 = pneg %p179
        %p262 = pneg %p176
        %p263 = scmp.lt.s32.totalorder %s27, 1
        %s264 = scalar_select %p263, %s27, 1
        %s265 = smul.addr %s264, 2
        %s266 = smul.addr %s265, 8
        %s267 = scalar_lea.vmem %s7, %s266
        %p268 = scmp.lt.s32.totalorder %s27, 1
        %s269 = scalar_select %p268, %s27, 1
        %s270 = smul.addr %s269, 2
        %s271 = smul.addr %s270, 8
        %s272 = scalar_lea.vmem %s1, %s271
        %p273 = scmp.lt.s32.totalorder %s27, 1
        %s274 = scalar_select %p273, %s27, 1
        %s275 = smul.addr %s274, 2
        %s276 = smul.addr %s275, 8
        %s277 = scalar_lea.vmem %s7, %s276
        %v278 = vld [vmem:[%s272] sm:$0xff]
        %v279 = vld [vmem:[%s272 + $0x8] sm:$0x1]
        %v280 = vld [vmem:[%s2] sm:$0xff]
        %v281 = vld [vmem:[%s2 + $0x8] sm:$0x1]
        %v282 = vadd.f32 %v278, %v280
        %v283 = vadd.f32 %v279, %v281
        %v284 = vld [vmem:[%s3] sm:$0xff]
        %v285 = vld [vmem:[%s3 + $0x8] sm:$0xff]
        %v286 = vld [vmem:[%s3 + $0x10] sm:$0xff]
        %v287 = vld [vmem:[%s3 + $0x18] sm:$0xff]
        %v288 = vld [vmem:[%s4] sm:$0x1]
        %v290 = vperm.slane %v288, 0
        %vm292 = vcmask 261120
        %v294 = vsel %vm292, %v282, 0
        %v297 = vsel %vm292, %v283, 0
        %299 = vmatpush.msra.mxu0 0.0
        %300 = vmatpush.msra.mxu0 0.0
        %301 = vmatpush.msra.mxu0 0.0
        %302 = vmatpush.msra.mxu0 0.0
        %303 = vmatpush.msra.mxu0 0.0
        %304 = vmatpush.msra.mxu0 0.0
        %305 = vmatpush.msra.mxu0 0.0
        %306 = vmatpush.msra.mxu0 0.0
        %307 = vmatpush.msra.mxu0 0.0
        %308 = vmatpush.msra.mxu0 0.0
        %309 = vmatpush.msra.mxu0 0.0
        %310 = vmatpush.msra.mxu0 0.0
        %311 = vmatpush.msra.mxu0 %v287
        %312 = vmatpush.msra.mxu0 %v286
        %313 = vmatpush.msra.mxu0 %v285
        %314 = vmatpush.msra.mxu0 %v284
        %315 = vmatmul.f32.gmra.mxu0 %v294
        %v316 = vpop.f32.mrf.mxu0
        %v317 = vadd.f32 %v290, %v316
        %318 = vmatmul.f32.gmra.mxu0 %v297
        %v319 = vpop.f32.mrf.mxu0
        %v320 = vadd.f32 %v290, %v319
        %321 = vdwg.mxu0
        %324 = vrot.lane.b32.xlu0 %v317, 120
        %v325 = vpop.permute.xlu0 %324
        %326 = vrot.lane.b32.xlu0 %v320, 120
        %v327 = vpop.permute.xlu0 %326
        %328 = vrot.lane.b32.xlu0 %v317, 112
        %v329 = vpop.permute.xlu0 %328
        %330 = vrot.lane.b32.xlu0 %v320, 112
        %v331 = vpop.permute.xlu0 %330
        %332 = vrot.lane.b32.xlu0 %v317, 104
        %v333 = vpop.permute.xlu0 %332
        %334 = vrot.lane.b32.xlu0 %v320, 104
        %v335 = vpop.permute.xlu0 %334
        %336 = vrot.lane.b32.xlu0 %v317, 96
        %v337 = vpop.permute.xlu0 %336
        %338 = vrot.lane.b32.xlu0 %v320, 96
        %v339 = vpop.permute.xlu0 %338
        %vm340 = vcmask 64512
        %v341 = vsel %vm340, %v317, 0
        %v343 = vsel %vm340, %v320, 0
        %v345 = vsel %vm340, %v337, 0
        %v347 = vsel %vm340, %v339, 0
        %349 = vmatpush.xpose.msra.mxu0 0.0
        %350 = vmatpush.xpose.msra.mxu0 0.0
        %351 = vmatpush.xpose.msra.mxu0 0.0
        %352 = vmatpush.xpose.msra.mxu0 0.0
        %353 = vmatpush.xpose.msra.mxu0 0.0
        %354 = vmatpush.xpose.msra.mxu0 0.0
        %355 = vmatpush.xpose.msra.mxu0 0.0
        %356 = vmatpush.xpose.msra.mxu0 0.0
        %357 = vmatpush.xpose.msra.mxu0 0.0
        %358 = vmatpush.xpose.msra.mxu0 0.0
        %359 = vmatpush.xpose.msra.mxu0 0.0
        %360 = vmatpush.xpose.msra.mxu0 0.0
        %361 = vmatpush.xpose.msra.mxu0 0.0
        %362 = vmatpush.xpose.msra.mxu0 0.0
        %363 = vmatpush.xpose.msra.mxu0 %v347
        %364 = vmatpush.xpose.msra.mxu0 %v345
        %365 = vmatmul.f32.gmra.mxu0 %v341
        %v366 = vpop.f32.mrf.mxu0
        %v367 = vadd.f32 0.0, %v366
        %368 = vmatmul.f32.gmra.mxu0 %v343
        %v369 = vpop.f32.mrf.mxu0
        %v370 = vadd.f32 0.0, %v369
        %371 = vdwg.mxu0
        %372 = vrot.lane.b32.xlu0 %v325, 96
        %v373 = vpop.permute.xlu0 %372
        %374 = vrot.lane.b32.xlu0 %v327, 96
        %v375 = vpop.permute.xlu0 %374
        %v376 = vsel %vm340, %v325, 0
        %v378 = vsel %vm340, %v327, 0
        %v380 = vsel %vm340, %v373, 0
        %v382 = vsel %vm340, %v375, 0
        %384 = vmatpush.xpose.msra.mxu0 0.0
        %385 = vmatpush.xpose.msra.mxu0 0.0
        %386 = vmatpush.xpose.msra.mxu0 0.0
        %387 = vmatpush.xpose.msra.mxu0 0.0
        %388 = vmatpush.xpose.msra.mxu0 0.0
        %389 = vmatpush.xpose.msra.mxu0 0.0
        %390 = vmatpush.xpose.msra.mxu0 0.0
        %391 = vmatpush.xpose.msra.mxu0 0.0
        %392 = vmatpush.xpose.msra.mxu0 0.0
        %393 = vmatpush.xpose.msra.mxu0 0.0
        %394 = vmatpush.xpose.msra.mxu0 0.0
        %395 = vmatpush.xpose.msra.mxu0 0.0
        %396 = vmatpush.xpose.msra.mxu0 0.0
        %397 = vmatpush.xpose.msra.mxu0 0.0
        %398 = vmatpush.xpose.msra.mxu0 %v382
        %399 = vmatpush.xpose.msra.mxu0 %v380
        %400 = vmatmul.f32.gmra.mxu0 %v376
        %v401 = vpop.f32.mrf.mxu0
        %v402 = vadd.f32 0.0, %v401
        %403 = vmatmul.f32.gmra.mxu0 %v378
        %v404 = vpop.f32.mrf.mxu0
        %v405 = vadd.f32 0.0, %v404
        %406 = vdwg.mxu0
        %407 = vrot.lane.b32.xlu0 %v329, 96
        %v408 = vpop.permute.xlu0 %407
        %409 = vrot.lane.b32.xlu0 %v331, 96
        %v410 = vpop.permute.xlu0 %409
        %v411 = vsel %vm340, %v329, 0
        %v413 = vsel %vm340, %v331, 0
        %v415 = vsel %vm340, %v408, 0
        %v417 = vsel %vm340, %v410, 0
        %419 = vmatpush.xpose.msra.mxu0 0.0
        %420 = vmatpush.xpose.msra.mxu0 0.0
        %421 = vmatpush.xpose.msra.mxu0 0.0
        %422 = vmatpush.xpose.msra.mxu0 0.0
        %423 = vmatpush.xpose.msra.mxu0 0.0
        %424 = vmatpush.xpose.msra.mxu0 0.0
        %425 = vmatpush.xpose.msra.mxu0 0.0
        %426 = vmatpush.xpose.msra.mxu0 0.0
        %427 = vmatpush.xpose.msra.mxu0 0.0
        %428 = vmatpush.xpose.msra.mxu0 0.0
        %429 = vmatpush.xpose.msra.mxu0 0.0
        %430 = vmatpush.xpose.msra.mxu0 0.0
        %431 = vmatpush.xpose.msra.mxu0 0.0
        %432 = vmatpush.xpose.msra.mxu0 0.0
        %433 = vmatpush.xpose.msra.mxu0 %v417
        %434 = vmatpush.xpose.msra.mxu0 %v415
        %435 = vmatmul.f32.gmra.mxu0 %v411
        %v436 = vpop.f32.mrf.mxu0
        %v437 = vadd.f32 0.0, %v436
        %438 = vmatmul.f32.gmra.mxu0 %v413
        %v439 = vpop.f32.mrf.mxu0
        %v440 = vadd.f32 0.0, %v439
        %441 = vdwg.mxu0
        %442 = vrot.lane.b32.xlu0 %v333, 96
        %v443 = vpop.permute.xlu0 %442
        %444 = vrot.lane.b32.xlu0 %v335, 96
        %v445 = vpop.permute.xlu0 %444
        %v446 = vsel %vm340, %v333, 0
        %v448 = vsel %vm340, %v335, 0
        %v450 = vsel %vm340, %v443, 0
        %v452 = vsel %vm340, %v445, 0
        %454 = vmatpush.xpose.msra.mxu0 0.0
        %455 = vmatpush.xpose.msra.mxu0 0.0
        %456 = vmatpush.xpose.msra.mxu0 0.0
        %457 = vmatpush.xpose.msra.mxu0 0.0
        %458 = vmatpush.xpose.msra.mxu0 0.0
        %459 = vmatpush.xpose.msra.mxu0 0.0
        %460 = vmatpush.xpose.msra.mxu0 0.0
        %461 = vmatpush.xpose.msra.mxu0 0.0
        %462 = vmatpush.xpose.msra.mxu0 0.0
        %463 = vmatpush.xpose.msra.mxu0 0.0
        %464 = vmatpush.xpose.msra.mxu0 0.0
        %465 = vmatpush.xpose.msra.mxu0 0.0
        %466 = vmatpush.xpose.msra.mxu0 0.0
        %467 = vmatpush.xpose.msra.mxu0 0.0
        %468 = vmatpush.xpose.msra.mxu0 %v452
        %469 = vmatpush.xpose.msra.mxu0 %v450
        %470 = vmatmul.f32.gmra.mxu0 %v446
        %v471 = vpop.f32.mrf.mxu0
        %v472 = vadd.f32 0.0, %v471
        %473 = vmatmul.f32.gmra.mxu0 %v448
        %v474 = vpop.f32.mrf.mxu0
        %v475 = vadd.f32 0.0, %v474
        %476 = vdwg.mxu0
        %s477 = sld [smem:[#allocation3 + %s27]]
        %v478 = vlaneseq
        %v479 = vand.u32 %v478, 127
        %v480 = vstv %s477
        %vm481 = vcmp.lt.s32.totalorder %v479, %v480
        %v482 = vsel %vm481, 1, 0
        %vm483 = vcmp.eq.s32.totalorder %v482, 1
        %v484 = vsel %vm483, %v367, -1e+30
        %v485 = vsel %vm483, %v370, -1e+30
        %v486 = vsel %vm483, %v402, -1e+30
        %v487 = vsel %vm483, %v405, -1e+30
        %v488 = vsel %vm483, %v437, -1e+30
        %v489 = vsel %vm483, %v440, -1e+30
        %v490 = vsel %vm483, %v472, -1e+30
        %v491 = vsel %vm483, %v475, -1e+30
        %vm492 = vcmask 72704
        %v493 = vsel %vm492, %v484, -inf
        %494 = vmax.xlane.f32.xlu0 %v493
        %v495 = vpop.xlane.xlu0 %494
        %vm496 = vcmask 65536
        %v497 = vsel %vm496, %v485, -inf
        %498 = vmax.xlane.f32.xlu0 %v497
        %v499 = vpop.xlane.xlu0 %498
        %v500 = vsel %vm492, %v486, -inf
        %501 = vmax.xlane.f32.xlu0 %v500
        %v502 = vpop.xlane.xlu0 %501
        %v503 = vsel %vm496, %v487, -inf
        %504 = vmax.xlane.f32.xlu0 %v503
        %v505 = vpop.xlane.xlu0 %504
        %v506 = vsel %vm492, %v488, -inf
        %507 = vmax.xlane.f32.xlu0 %v506
        %v508 = vpop.xlane.xlu0 %507
        %v509 = vsel %vm496, %v489, -inf
        %510 = vmax.xlane.f32.xlu0 %v509
        %v511 = vpop.xlane.xlu0 %510
        %v512 = vsel %vm492, %v490, -inf
        %513 = vmax.xlane.f32.xlu0 %v512
        %v514 = vpop.xlane.xlu0 %513
        %v515 = vsel %vm496, %v491, -inf
        %516 = vmax.xlane.f32.xlu0 %v515
        %v517 = vpop.xlane.xlu0 %516
        %v518 = vsub.f32 %v484, %v495
        %v519 = vsub.f32 %v485, %v499
        %v520 = vsub.f32 %v486, %v502
        %v521 = vsub.f32 %v487, %v505
        %v522 = vsub.f32 %v488, %v508
        %v523 = vsub.f32 %v489, %v511
        %v524 = vsub.f32 %v490, %v514
        %v525 = vsub.f32 %v491, %v517
        %v526 = vmul.f32 %v518, 1.442695
        %v527 = vpow.pop %v526
        %v528 = vmul.f32 %v519, 1.442695
        %v529 = vpow.pop %v528
        %v530 = vmul.f32 %v520, 1.442695
        %v531 = vpow.pop %v530
        %v532 = vmul.f32 %v521, 1.442695
        %v533 = vpow.pop %v532
        %v534 = vmul.f32 %v522, 1.442695
        %v535 = vpow.pop %v534
        %v536 = vmul.f32 %v523, 1.442695
        %v537 = vpow.pop %v536
        %v538 = vmul.f32 %v524, 1.442695
        %v539 = vpow.pop %v538
        %v540 = vmul.f32 %v525, 1.442695
        %v541 = vpow.pop %v540
        %v542 = vsel %vm492, %v527, 0.0
        %543 = vadd.xlane.f32.xlu0 %v542
        %v544 = vpop.xlane.xlu0 %543
        %v545 = vsel %vm496, %v529, 0.0
        %546 = vadd.xlane.f32.xlu0 %v545
        %v547 = vpop.xlane.xlu0 %546
        %v548 = vsel %vm492, %v531, 0.0
        %549 = vadd.xlane.f32.xlu0 %v548
        %v550 = vpop.xlane.xlu0 %549
        %v551 = vsel %vm496, %v533, 0.0
        %552 = vadd.xlane.f32.xlu0 %v551
        %v553 = vpop.xlane.xlu0 %552
        %v554 = vsel %vm492, %v535, 0.0
        %555 = vadd.xlane.f32.xlu0 %v554
        %v556 = vpop.xlane.xlu0 %555
        %v557 = vsel %vm496, %v537, 0.0
        %558 = vadd.xlane.f32.xlu0 %v557
        %v559 = vpop.xlane.xlu0 %558
        %v560 = vsel %vm492, %v539, 0.0
        %561 = vadd.xlane.f32.xlu0 %v560
        %v562 = vpop.xlane.xlu0 %561
        %v563 = vsel %vm496, %v541, 0.0
        %564 = vadd.xlane.f32.xlu0 %v563
        %v565 = vpop.xlane.xlu0 %564
        %v566 = vrcp.pop %v544
        %v567 = vrcp.pop %v547
        %v568 = vrcp.pop %v550
        %v569 = vrcp.pop %v553
        %v570 = vrcp.pop %v556
        %v571 = vrcp.pop %v559
        %v572 = vrcp.pop %v562
        %v573 = vrcp.pop %v565
        %v574 = vmul.f32 %v527, %v566
        %v575 = vmul.f32 %v529, %v567
        %v576 = vmul.f32 %v531, %v568
        %v577 = vmul.f32 %v533, %v569
        %v578 = vmul.f32 %v535, %v570
        %v579 = vmul.f32 %v537, %v571
        %v580 = vmul.f32 %v539, %v572
        %v581 = vmul.f32 %v541, %v573
        %582 = vrot.lane.b32.xlu0 %v317, 64
        %v583 = vpop.permute.xlu0 %582
        %584 = vrot.lane.b32.xlu0 %v320, 64
        %v585 = vpop.permute.xlu0 %584
        %v588 = vsel %vm492, %v574, 0
        %v591 = vsel %vm492, %v575, 0
        %vm593 = vcmask 1040384
        %v594 = vsel %vm593, %v585, 0
        %596 = vmatpush.msra.mxu0 0.0
        %597 = vmatpush.msra.mxu0 0.0
        %598 = vmatpush.msra.mxu0 0.0
        %599 = vmatpush.msra.mxu0 0.0
        %600 = vmatpush.msra.mxu0 0.0
        %601 = vmatpush.msra.mxu0 0.0
        %602 = vmatpush.msra.mxu0 0.0
        %603 = vmatpush.msra.mxu0 0.0
        %604 = vmatpush.msra.mxu0 0.0
        %605 = vmatpush.msra.mxu0 0.0
        %606 = vmatpush.msra.mxu0 0.0
        %607 = vmatpush.msra.mxu0 0.0
        %608 = vmatpush.msra.mxu0 0.0
        %609 = vmatpush.msra.mxu0 0.0
        %610 = vmatpush.msra.mxu0 %v594
        %611 = vmatpush.msra.mxu0 %v583
        %612 = vmatmul.f32.gmra.mxu0 %v588
        %v613 = vpop.f32.mrf.mxu0
        %v614 = vadd.f32 0.0, %v613
        %615 = vmatmul.f32.gmra.mxu0 %v591
        %v616 = vpop.f32.mrf.mxu0
        %v617 = vadd.f32 0.0, %v616
        %618 = vdwg.mxu0
        %619 = vrot.lane.b32.xlu0 %v325, 64
        %v620 = vpop.permute.xlu0 %619
        %621 = vrot.lane.b32.xlu0 %v327, 64
        %v622 = vpop.permute.xlu0 %621
        %v625 = vsel %vm492, %v576, 0
        %v628 = vsel %vm492, %v577, 0
        %v630 = vsel %vm593, %v622, 0
        %632 = vmatpush.msra.mxu0 0.0
        %633 = vmatpush.msra.mxu0 0.0
        %634 = vmatpush.msra.mxu0 0.0
        %635 = vmatpush.msra.mxu0 0.0
        %636 = vmatpush.msra.mxu0 0.0
        %637 = vmatpush.msra.mxu0 0.0
        %638 = vmatpush.msra.mxu0 0.0
        %639 = vmatpush.msra.mxu0 0.0
        %640 = vmatpush.msra.mxu0 0.0
        %641 = vmatpush.msra.mxu0 0.0
        %642 = vmatpush.msra.mxu0 0.0
        %643 = vmatpush.msra.mxu0 0.0
        %644 = vmatpush.msra.mxu0 0.0
        %645 = vmatpush.msra.mxu0 0.0
        %646 = vmatpush.msra.mxu0 %v630
        %647 = vmatpush.msra.mxu0 %v620
        %648 = vmatmul.f32.gmra.mxu0 %v625
        %v649 = vpop.f32.mrf.mxu0
        %v650 = vadd.f32 0.0, %v649
        %651 = vmatmul.f32.gmra.mxu0 %v628
        %v652 = vpop.f32.mrf.mxu0
        %v653 = vadd.f32 0.0, %v652
        %654 = vdwg.mxu0
        %655 = vrot.lane.b32.xlu0 %v329, 64
        %v656 = vpop.permute.xlu0 %655
        %657 = vrot.lane.b32.xlu0 %v331, 64
        %v658 = vpop.permute.xlu0 %657
        %v661 = vsel %vm492, %v578, 0
        %v664 = vsel %vm492, %v579, 0
        %v666 = vsel %vm593, %v658, 0
        %668 = vmatpush.msra.mxu0 0.0
        %669 = vmatpush.msra.mxu0 0.0
        %670 = vmatpush.msra.mxu0 0.0
        %671 = vmatpush.msra.mxu0 0.0
        %672 = vmatpush.msra.mxu0 0.0
        %673 = vmatpush.msra.mxu0 0.0
        %674 = vmatpush.msra.mxu0 0.0
        %675 = vmatpush.msra.mxu0 0.0
        %676 = vmatpush.msra.mxu0 0.0
        %677 = vmatpush.msra.mxu0 0.0
        %678 = vmatpush.msra.mxu0 0.0
        %679 = vmatpush.msra.mxu0 0.0
        %680 = vmatpush.msra.mxu0 0.0
        %681 = vmatpush.msra.mxu0 0.0
        %682 = vmatpush.msra.mxu0 %v666
        %683 = vmatpush.msra.mxu0 %v656
        %684 = vmatmul.f32.gmra.mxu0 %v661
        %v685 = vpop.f32.mrf.mxu0
        %v686 = vadd.f32 0.0, %v685
        %687 = vmatmul.f32.gmra.mxu0 %v664
        %v688 = vpop.f32.mrf.mxu0
        %v689 = vadd.f32 0.0, %v688
        %690 = vdwg.mxu0
        %691 = vrot.lane.b32.xlu0 %v333, 64
        %v692 = vpop.permute.xlu0 %691
        %693 = vrot.lane.b32.xlu0 %v335, 64
        %v694 = vpop.permute.xlu0 %693
        %v697 = vsel %vm492, %v580, 0
        %v700 = vsel %vm492, %v581, 0
        %v702 = vsel %vm593, %v694, 0
        %704 = vmatpush.msra.mxu0 0.0
        %705 = vmatpush.msra.mxu0 0.0
        %706 = vmatpush.msra.mxu0 0.0
        %707 = vmatpush.msra.mxu0 0.0
        %708 = vmatpush.msra.mxu0 0.0
        %709 = vmatpush.msra.mxu0 0.0
        %710 = vmatpush.msra.mxu0 0.0
        %711 = vmatpush.msra.mxu0 0.0
        %712 = vmatpush.msra.mxu0 0.0
        %713 = vmatpush.msra.mxu0 0.0
        %714 = vmatpush.msra.mxu0 0.0
        %715 = vmatpush.msra.mxu0 0.0
        %716 = vmatpush.msra.mxu0 0.0
        %717 = vmatpush.msra.mxu0 0.0
        %718 = vmatpush.msra.mxu0 %v702
        %719 = vmatpush.msra.mxu0 %v692
        %720 = vmatmul.f32.gmra.mxu0 %v697
        %v721 = vpop.f32.mrf.mxu0
        %v722 = vadd.f32 0.0, %v721
        %723 = vmatmul.f32.gmra.mxu0 %v700
        %v724 = vpop.f32.mrf.mxu0
        %v725 = vadd.f32 0.0, %v724
        %726 = vdwg.mxu0
        %729 = vrot.lane.b32.xlu0 %v650, 8
        %v730 = vpop.permute.xlu0 %729
        %731 = vrot.lane.b32.xlu0 %v653, 8
        %v732 = vpop.permute.xlu0 %731
        %737 = vrot.lane.b32.xlu0 %v686, 16
        %v738 = vpop.permute.xlu0 %737
        %739 = vrot.lane.b32.xlu0 %v689, 16
        %v740 = vpop.permute.xlu0 %739
        %745 = vrot.lane.b32.xlu0 %v722, 24
        %v746 = vpop.permute.xlu0 %745
        %747 = vrot.lane.b32.xlu0 %v725, 24
        %v748 = vpop.permute.xlu0 %747
        %v751 = vsel %vm340, %v614, %v730
        %v752 = vsel %vm340, %v617, %v732
        %vm753 = vcmask 130048
        %v754 = vsel %vm753, %v751, %v738
        %v755 = vsel %vm753, %v752, %v740
        %vm756 = vcmask 195584
        %v757 = vsel %vm756, %v754, %v746
        %v758 = vsel %vm756, %v755, %v748
        %v759 = vld [vmem:[#allocation4] sm:$0xff]
        %v760 = vld [vmem:[#allocation4 + $0x8] sm:$0xff]
        %v761 = vld [vmem:[#allocation4 + $0x10] sm:$0xff]
        %v762 = vld [vmem:[#allocation4 + $0x18] sm:$0xff]
        %v763 = vld [vmem:[%s6] sm:$0x1]
        %v765 = vperm.slane %v763, 0
        %v768 = vsel %vm292, %v757, 0
        %v771 = vsel %vm292, %v758, 0
        %773 = vmatpush.msra.mxu0 0.0
        %774 = vmatpush.msra.mxu0 0.0
        %775 = vmatpush.msra.mxu0 0.0
        %776 = vmatpush.msra.mxu0 0.0
        %777 = vmatpush.msra.mxu0 0.0
        %778 = vmatpush.msra.mxu0 0.0
        %779 = vmatpush.msra.mxu0 0.0
        %780 = vmatpush.msra.mxu0 0.0
        %781 = vmatpush.msra.mxu0 0.0
        %782 = vmatpush.msra.mxu0 0.0
        %783 = vmatpush.msra.mxu0 0.0
        %784 = vmatpush.msra.mxu0 0.0
        %785 = vmatpush.msra.mxu0 %v762
        %786 = vmatpush.msra.mxu0 %v761
        %787 = vmatpush.msra.mxu0 %v760
        %788 = vmatpush.msra.mxu0 %v759
        %789 = vmatmul.f32.gmra.mxu0 %v768
        %v790 = vpop.f32.mrf.mxu0
        %v791 = vadd.f32 %v765, %v790
        %792 = vmatmul.f32.gmra.mxu0 %v771
        %v793 = vpop.f32.mrf.mxu0
        %v794 = vadd.f32 %v765, %v793
        %795 = vdwg.mxu0
        %796 = vst.msk [vmem:[%s277] sm:$0xff] %vm292, %v791
        %vm797 = vcmask 253952
        %798 = vst.msk [vmem:[%s277 + $0x8] sm:$0x1] %vm797, %v794
        %p799 = scmp.lt.s32.totalorder %s27, 1
        %s800 = scalar_select %p799, %s27, 1
        %s801 = smul.addr %s800, 2
        %s802 = smul.addr %s801, 8
        %s803 = scalar_lea.vmem %s7, %s802
        // Predicated region
        $region49: #{tpu_custom_call.1} parent=43 // pred_check
          %p804 = pneg %p176
        $region50: #{tpu_custom_call.1} parent=43 // pred_check_branch
          %806 = sbr.rel (%p804) target = $region52
        $region51: #{tpu_custom_call.1} parent=43 // pred_region
          _
        $region52: #{tpu_custom_call.1} parent=43 // pred_fallthru
          _
      $region44: #{tpu_custom_call.1} parent=5 // pred_fallthru
        _
      %p807 = scmp.le.s32.totalorder 2, %s22
      // Predicated region
      $region53: #{tpu_custom_call.1} parent=5 // pred_check
        %p808 = pneg %p807
      $region54: #{tpu_custom_call.1} parent=5 // pred_check_branch
        %810 = sbr.rel (%p808) target = $region56
      $region55: #{tpu_custom_call.1} parent=5 // pred_region
        %s811 = ssub.s32 %s22, 2
        // Predicated region
        $region57: #{tpu_custom_call.1} parent=55 // pred_check
          %p812 = pneg %p182
        $region58: #{tpu_custom_call.1} parent=55 // pred_check_branch
          %814 = sbr.rel (%p812) target = $region60
        $region59: #{tpu_custom_call.1} parent=55 // pred_region
          %p815 = scmp.lt.s32.totalorder %s28, 1
          %s816 = scalar_select %p815, %s28, 1
          %s817 = smul.addr %s816, 2
          %s818 = smul.addr %s817, 8
          %s819 = scalar_lea.vmem %s7, %s818
        $region60: #{tpu_custom_call.1} parent=55 // pred_fallthru
          _
      $region56: #{tpu_custom_call.1} parent=5 // pred_fallthru
        _
    $region6: #{tpu_custom_call.1} parent=1 // loop_footer
      %s26 = sadd.s32 1, %s22
    $region7: #{tpu_custom_call.1} parent=1 // loop_footer_branch
      %21 = sbr.rel target = $region3
    $region8: #{tpu_custom_call.1} parent=1 // loop_exit
      _
    %820 = vsyncpa [#allocation5], 1
    %s821 = scalar_lea.sflag [#allocation5], 1
    %822 = vsyncpa %s821, 1

</llo_original>
